<compile_context>
chip_gen: v6e
topology: v6e:2x2x1
jax: 0.10.0
libtpu: 0.0.40
codegen_flags: <defaults>
</compile_context>

<pallas_src>
import jax
import jax.numpy as jnp
from jax import lax
from jax.experimental import pallas as pl
from jax.experimental.pallas import tpu as pltpu


# ----------------------------------------------------------------------------
# Fused kernel: input projection (all timesteps) -> LSTM recurrence -> decoder
# PyTorch gate order for weight_ih/weight_hh/bias is (i, f, g, o).
# ----------------------------------------------------------------------------
def _make_kernel(T, B, H):
    def kernel(x_ref, wf_ref, bf_ref, whh_ref, dw_ref, db_ref, out_ref):
        # ---- 1) Input projection for all timesteps: ONE MXU matmul --------
        # x_ref is already time-major flat (T*B, E) (wrapper-side layout),
        # so no in-kernel transpose/reshape is needed.
        ih = (
            jnp.dot(x_ref[...], wf_ref[...],
                    preferred_element_type=jnp.float32)
            + bf_ref[...]
        )  # (T*B, 4H), vreg-resident (8 f32 vregs at these sizes)

        # ---- 2) Gate-activation constants, hoisted out of the loop --------
        # sigmoid(x) = 0.5*(1 + tanh(x/2))  (exact identity)
        # per-lane pre-scale a = [0.5, 0.5, 1.0, 0.5] and post-shift
        # b = [0.5, 0.5, 0.0, 0.5] over the (i, f, g, o) 32-lane segments.
        lane = lax.broadcasted_iota(jnp.int32, (1, 4 * H), 1)
        is_g = jnp.logical_and(lane >= 2 * H, lane < 3 * H)
        scale = jnp.where(is_g, 1.0, 0.5).astype(jnp.float32)  # pre & post mul
        shift = jnp.where(is_g, 0.0, 0.5).astype(jnp.float32)  # post add

        w_hh = whh_ref[...]  # (H, 4H), loaded once
        h = jnp.zeros((B, H), jnp.float32)
        c = jnp.zeros((B, H), jnp.float32)

        # ---- 3) Fully-unrolled recurrence (T static & small) ---------------
        for t in range(T):
            # static, sublane-aligned slice of the precomputed gates
            gates = ih[t * B:(t + 1) * B, :] + jnp.dot(
                h, w_hh, preferred_element_type=jnp.float32)  # (B, 4H)
            # ONE full-vreg tanh handles all four gates
            tg = jnp.tanh(gates * scale)
            act = tg * scale + shift          # i/f/o -> sigmoid, g -> tanh
            i_g = act[:, 0 * H:1 * H]
            f_g = act[:, 1 * H:2 * H]
            g_g = act[:, 2 * H:3 * H]
            o_g = act[:, 3 * H:4 * H]
            c = f_g * c + i_g * g_g
            h = o_g * jnp.tanh(c)

        # ---- 4) Decoder fused into the same kernel -------------------------
        out_ref[...] = (
            jnp.dot(h, dw_ref[...], preferred_element_type=jnp.float32)
            + db_ref[...]
        ).astype(out_ref.dtype)

    return kernel


# ----------------------------------------------------------------------------
# Wrapper
# ----------------------------------------------------------------------------
def lstm_model_forward(params, x):
    """x: (B, T, enc_inpt_size) -> (B, decd_out_size)."""
    B, T, E = x.shape
    H = params["w_hh_t"].shape[0]
    Dout = params["dec_w"].shape[1]

    # Fold the encoder Linear into the LSTM input projection (valid in eval
    # mode where dropout is identity).  Tiny one-time wrapper-side matmuls.
    w_fused = params["enc_w"] @ params["w_ih_t"]                      # (E, 4H)
    b_fused = params["enc_b"] @ params["w_ih_t"] + params["lstm_b"]   # (1, 4H)

    # Pad batch to a sublane multiple of 8 so (B, H)/(B, 4H) tiles are dense.
    B_pad = max(8, ((B + 7) // 8) * 8)
    if B_pad != B:
        x_p = jnp.zeros((B_pad, T, E), x.dtype).at[:B].set(x)
    else:
        x_p = x

    # Host-side layout plumbing: time-major, flattened (T*B_pad, E) so the
    # kernel never transposes/reshapes the input on its critical path.
    x_tm = jnp.transpose(x_p, (1, 0, 2)).reshape(T * B_pad, E)

    # TODO(synk): on v7x with B_pad >= 16, make batch a "parallel" grid axis
    # (2 TensorCores); at B_pad=8 a single grid step is the right shape.
    # TODO(synk): if T or B scale, chunk the hoisted input projection over T
    # (or store ih in bf16 on v6e/v7x) and set vmem_limit_bytes explicitly.
    out = pl.pallas_call(
        _make_kernel(T, B_pad, H),
        out_shape=jax.ShapeDtypeStruct((B_pad, Dout), x.dtype),
        grid=(1,),
        in_specs=[
            pl.BlockSpec((T * B_pad, E), lambda i: (0, 0)),
            pl.BlockSpec((E, 4 * H), lambda i: (0, 0)),
            pl.BlockSpec((1, 4 * H), lambda i: (0, 0)),
            pl.BlockSpec((H, 4 * H), lambda i: (0, 0)),
            pl.BlockSpec((H, Dout), lambda i: (0, 0)),
            pl.BlockSpec((1, Dout), lambda i: (0, 0)),
        ],
        out_specs=pl.BlockSpec((B_pad, Dout), lambda i: (0, 0)),
        compiler_params=pltpu.CompilerParams(
            dimension_semantics=("arbitrary",),
        ),
    )(x_tm, w_fused, b_fused, params["w_hh_t"], params["dec_w"],
      params["dec_b"])

    return out[:B]


# ----------------------------------------------------------------------------
# Params (PyTorch-layout equivalents, weights pre-transposed to x @ W form)
# ----------------------------------------------------------------------------
def init_params(key, enc_inpt_size, rnn_inpt_size, rnn_hid_size,
                decd_out_size):
    ks = jax.random.split(key, 8)
    u = lambda k, shape, s: jax.random.uniform(k, shape, jnp.float32, -s, s)
    return {
        "enc_w": u(ks[0], (enc_inpt_size, rnn_inpt_size), 0.1),
        "enc_b": u(ks[1], (1, rnn_inpt_size), 0.1),
        "w_ih_t": u(ks[2], (rnn_inpt_size, 4 * rnn_hid_size), 0.1),
        "w_hh_t": u(ks[3], (rnn_hid_size, 4 * rnn_hid_size), 0.1),
        # combined b_ih + b_hh
        "lstm_b": u(ks[4], (1, 4 * rnn_hid_size), 0.1)
        + u(ks[5], (1, 4 * rnn_hid_size), 0.1),
        "dec_w": u(ks[6], (rnn_hid_size, decd_out_size), 0.1),
        "dec_b": u(ks[7], (1, decd_out_size), 0.1),
    }


# ----------------------------------------------------------------------------
# Pure-JAX reference (same math, un-fused, plain sigmoid/tanh) for sanity check
# ----------------------------------------------------------------------------
def _reference_forward(params, x, rnn_hid_size):
    B, T, E = x.shape
    H = rnn_hid_size
    emb = x.reshape(-1, E) @ params["enc_w"] + params["enc_b"]
    emb = emb.reshape(B, T, -1)
    h = jnp.zeros((B, H), jnp.float32)
    c = jnp.zeros((B, H), jnp.float32)
    for t in range(T):
        gates = emb[:, t, :] @ params["w_ih_t"] + h @ params["w_hh_t"] \
            + params["lstm_b"]
        i_g = jax.nn.sigmoid(gates[:, 0 * H:1 * H])
        f_g = jax.nn.sigmoid(gates[:, 1 * H:2 * H])
        g_g = jnp.tanh(gates[:, 2 * H:3 * H])
        o_g = jax.nn.sigmoid(gates[:, 3 * H:4 * H])
        c = f_g * c + i_g * g_g
        h = o_g * jnp.tanh(c)
    return h @ params["dec_w"] + params["dec_b"]


if __name__ == "__main__":
    # Small shapes consistent with the module's forward.
    B, T = 2, 8
    enc_inpt_size = 16
    rnn_inpt_size = 32
    rnn_hid_size = 32
    decd_out_size = 8

    key = jax.random.PRNGKey(0)
    kx, kp = jax.random.split(key)
    x = jax.random.normal(kx, (B, T, enc_inpt_size), jnp.float32)
    params = init_params(kp, enc_inpt_size, rnn_inpt_size, rnn_hid_size,
                         decd_out_size)
    # TODO(synk): nn.Dropout(p) training-mode mask not applied (eval semantics).

    out = lstm_model_forward(params, x)
    out = jax.block_until_ready(out)
    assert out.shape == (B, decd_out_size)

    ref = _reference_forward(params, x, rnn_hid_size)
    assert jnp.allclose(out, ref, rtol=1e-2, atol=1e-3), "mismatch vs reference"

    print("KERNEL_OK")
</pallas_src>

<mosaic_0001>
module attributes {stable_mosaic.version = 11 : i64} {
  func.func @kernel(%arg0: i32, %arg1: memref<64x16xf32, #tpu.memory_space<vmem>>, %arg2: memref<16x128xf32, #tpu.memory_space<vmem>>, %arg3: memref<1x128xf32, #tpu.memory_space<vmem>>, %arg4: memref<32x128xf32, #tpu.memory_space<vmem>>, %arg5: memref<32x8xf32, #tpu.memory_space<vmem>>, %arg6: memref<1x8xf32, #tpu.memory_space<vmem>>, %arg7: memref<8x8xf32, #tpu.memory_space<vmem>>) attributes {dimension_semantics = [#tpu.dimension_semantics<arbitrary>], iteration_bounds = array<i64: 1>, scalar_prefetch = 0 : i64, scratch_operands = 0 : i64, tpu.core_type = #tpu.core_type<tc>, window_params = [{pipeline_mode = #tpu.pipeline_mode<synchronous>, transform_indices = @transform_0, window_bounds = array<i64: 64, 16>}, {pipeline_mode = #tpu.pipeline_mode<synchronous>, transform_indices = @transform_1, window_bounds = array<i64: 16, 128>}, {pipeline_mode = #tpu.pipeline_mode<synchronous>, transform_indices = @transform_2, window_bounds = array<i64: 1, 128>}, {pipeline_mode = #tpu.pipeline_mode<synchronous>, transform_indices = @transform_3, window_bounds = array<i64: 32, 128>}, {pipeline_mode = #tpu.pipeline_mode<synchronous>, transform_indices = @transform_4, window_bounds = array<i64: 32, 8>}, {pipeline_mode = #tpu.pipeline_mode<synchronous>, transform_indices = @transform_5, window_bounds = array<i64: 1, 8>}, {pipeline_mode = #tpu.pipeline_mode<synchronous>, transform_indices = @transform_6, window_bounds = array<i64: 8, 8>}]} {
    %c0 = arith.constant 0 : index
    %c0_0 = arith.constant 0 : index
    %0 = vector.load %arg1[%c0, %c0_0] : memref<64x16xf32, #tpu.memory_space<vmem>>, vector<64x16xf32>
    %c0_1 = arith.constant 0 : index
    %c0_2 = arith.constant 0 : index
    %1 = vector.load %arg2[%c0_1, %c0_2] : memref<16x128xf32, #tpu.memory_space<vmem>>, vector<16x128xf32>
    %cst = arith.constant dense<0.000000e+00> : vector<64x128xf32>
    %2 = tpu.matmul %0, %1, %cst {dimension_numbers = #tpu.dot_dimension_numbers<[1], [0], [0], [1], [0, 0, 1, 1], [], []>} : vector<64x16xf32>, vector<16x128xf32>, vector<64x128xf32> -> vector<64x128xf32>
    %c0_3 = arith.constant 0 : index
    %c0_4 = arith.constant 0 : index
    %3 = vector.load %arg3[%c0_3, %c0_4] : memref<1x128xf32, #tpu.memory_space<vmem>>, vector<1x128xf32>
    %4 = vector.broadcast %3 : vector<1x128xf32> to vector<64x128xf32>
    %5 = arith.addf %2, %4 : vector<64x128xf32>
    %6 = tpu.iota {dimensions = array<i32: 1>} : vector<1x128xi32>
    %c64_i32 = arith.constant 64 : i32
    %7 = vector.broadcast %c64_i32 : i32 to vector<1x128xi32>
    %8 = arith.cmpi sge, %6, %7 : vector<1x128xi32>
    %c96_i32 = arith.constant 96 : i32
    %9 = vector.broadcast %c96_i32 : i32 to vector<1x128xi32>
    %10 = arith.cmpi slt, %6, %9 : vector<1x128xi32>
    %11 = arith.andi %8, %10 : vector<1x128xi1>
    %cst_5 = arith.constant 1.000000e+00 : f32
    %cst_6 = arith.constant 5.000000e-01 : f32
    %12 = vector.broadcast %cst_5 : f32 to vector<1x128xf32>
    %13 = vector.broadcast %cst_6 : f32 to vector<1x128xf32>
    %14 = arith.select %11, %12, %13 : vector<1x128xi1>, vector<1x128xf32>
    %cst_7 = arith.constant 0.000000e+00 : f32
    %cst_8 = arith.constant 5.000000e-01 : f32
    %15 = vector.broadcast %cst_7 : f32 to vector<1x128xf32>
    %16 = vector.broadcast %cst_8 : f32 to vector<1x128xf32>
    %17 = arith.select %11, %15, %16 : vector<1x128xi1>, vector<1x128xf32>
    %c0_9 = arith.constant 0 : index
    %c0_10 = arith.constant 0 : index
    %18 = vector.load %arg4[%c0_9, %c0_10] : memref<32x128xf32, #tpu.memory_space<vmem>>, vector<32x128xf32>
    %cst_11 = arith.constant 0.000000e+00 : f32
    %19 = vector.broadcast %cst_11 : f32 to vector<8x32xf32>
    %cst_12 = arith.constant 0.000000e+00 : f32
    %20 = vector.broadcast %cst_12 : f32 to vector<8x32xf32>
    %21 = vector.extract_strided_slice %5 {offsets = [0, 0], sizes = [8, 128], strides = [1, 1]} : vector<64x128xf32> to vector<8x128xf32>
    %cst_13 = arith.constant dense<0.000000e+00> : vector<8x128xf32>
    %22 = tpu.matmul %19, %18, %cst_13 {dimension_numbers = #tpu.dot_dimension_numbers<[1], [0], [0], [1], [0, 0, 1, 1], [], []>} : vector<8x32xf32>, vector<32x128xf32>, vector<8x128xf32> -> vector<8x128xf32>
    %23 = arith.addf %21, %22 : vector<8x128xf32>
    %24 = vector.broadcast %14 : vector<1x128xf32> to vector<8x128xf32>
    %25 = arith.mulf %23, %24 : vector<8x128xf32>
    %26 = math.tanh %25 : vector<8x128xf32>
    %27 = vector.broadcast %14 : vector<1x128xf32> to vector<8x128xf32>
    %28 = arith.mulf %26, %27 : vector<8x128xf32>
    %29 = vector.broadcast %17 : vector<1x128xf32> to vector<8x128xf32>
    %30 = arith.addf %28, %29 : vector<8x128xf32>
    %31 = vector.extract_strided_slice %30 {offsets = [0, 0], sizes = [8, 32], strides = [1, 1]} : vector<8x128xf32> to vector<8x32xf32>
    %32 = vector.extract_strided_slice %30 {offsets = [0, 32], sizes = [8, 32], strides = [1, 1]} : vector<8x128xf32> to vector<8x32xf32>
    %33 = vector.extract_strided_slice %30 {offsets = [0, 64], sizes = [8, 32], strides = [1, 1]} : vector<8x128xf32> to vector<8x32xf32>
    %34 = vector.extract_strided_slice %30 {offsets = [0, 96], sizes = [8, 32], strides = [1, 1]} : vector<8x128xf32> to vector<8x32xf32>
    %35 = arith.mulf %32, %20 : vector<8x32xf32>
    %36 = arith.mulf %31, %33 : vector<8x32xf32>
    %37 = arith.addf %35, %36 : vector<8x32xf32>
    %38 = math.tanh %37 : vector<8x32xf32>
    %39 = arith.mulf %34, %38 : vector<8x32xf32>
    %40 = vector.extract_strided_slice %5 {offsets = [8, 0], sizes = [8, 128], strides = [1, 1]} : vector<64x128xf32> to vector<8x128xf32>
    %cst_14 = arith.constant dense<0.000000e+00> : vector<8x128xf32>
    %41 = tpu.matmul %39, %18, %cst_14 {dimension_numbers = #tpu.dot_dimension_numbers<[1], [0], [0], [1], [0, 0, 1, 1], [], []>} : vector<8x32xf32>, vector<32x128xf32>, vector<8x128xf32> -> vector<8x128xf32>
    %42 = arith.addf %40, %41 : vector<8x128xf32>
    %43 = vector.broadcast %14 : vector<1x128xf32> to vector<8x128xf32>
    %44 = arith.mulf %42, %43 : vector<8x128xf32>
    %45 = math.tanh %44 : vector<8x128xf32>
    %46 = vector.broadcast %14 : vector<1x128xf32> to vector<8x128xf32>
    %47 = arith.mulf %45, %46 : vector<8x128xf32>
    %48 = vector.broadcast %17 : vector<1x128xf32> to vector<8x128xf32>
    %49 = arith.addf %47, %48 : vector<8x128xf32>
    %50 = vector.extract_strided_slice %49 {offsets = [0, 0], sizes = [8, 32], strides = [1, 1]} : vector<8x128xf32> to vector<8x32xf32>
    %51 = vector.extract_strided_slice %49 {offsets = [0, 32], sizes = [8, 32], strides = [1, 1]} : vector<8x128xf32> to vector<8x32xf32>
    %52 = vector.extract_strided_slice %49 {offsets = [0, 64], sizes = [8, 32], strides = [1, 1]} : vector<8x128xf32> to vector<8x32xf32>
    %53 = vector.extract_strided_slice %49 {offsets = [0, 96], sizes = [8, 32], strides = [1, 1]} : vector<8x128xf32> to vector<8x32xf32>
    %54 = arith.mulf %51, %37 : vector<8x32xf32>
    %55 = arith.mulf %50, %52 : vector<8x32xf32>
    %56 = arith.addf %54, %55 : vector<8x32xf32>
    %57 = math.tanh %56 : vector<8x32xf32>
    %58 = arith.mulf %53, %57 : vector<8x32xf32>
    %59 = vector.extract_strided_slice %5 {offsets = [16, 0], sizes = [8, 128], strides = [1, 1]} : vector<64x128xf32> to vector<8x128xf32>
    %cst_15 = arith.constant dense<0.000000e+00> : vector<8x128xf32>
    %60 = tpu.matmul %58, %18, %cst_15 {dimension_numbers = #tpu.dot_dimension_numbers<[1], [0], [0], [1], [0, 0, 1, 1], [], []>} : vector<8x32xf32>, vector<32x128xf32>, vector<8x128xf32> -> vector<8x128xf32>
    %61 = arith.addf %59, %60 : vector<8x128xf32>
    %62 = vector.broadcast %14 : vector<1x128xf32> to vector<8x128xf32>
    %63 = arith.mulf %61, %62 : vector<8x128xf32>
    %64 = math.tanh %63 : vector<8x128xf32>
    %65 = vector.broadcast %14 : vector<1x128xf32> to vector<8x128xf32>
    %66 = arith.mulf %64, %65 : vector<8x128xf32>
    %67 = vector.broadcast %17 : vector<1x128xf32> to vector<8x128xf32>
    %68 = arith.addf %66, %67 : vector<8x128xf32>
    %69 = vector.extract_strided_slice %68 {offsets = [0, 0], sizes = [8, 32], strides = [1, 1]} : vector<8x128xf32> to vector<8x32xf32>
    %70 = vector.extract_strided_slice %68 {offsets = [0, 32], sizes = [8, 32], strides = [1, 1]} : vector<8x128xf32> to vector<8x32xf32>
    %71 = vector.extract_strided_slice %68 {offsets = [0, 64], sizes = [8, 32], strides = [1, 1]} : vector<8x128xf32> to vector<8x32xf32>
    %72 = vector.extract_strided_slice %68 {offsets = [0, 96], sizes = [8, 32], strides = [1, 1]} : vector<8x128xf32> to vector<8x32xf32>
    %73 = arith.mulf %70, %56 : vector<8x32xf32>
    %74 = arith.mulf %69, %71 : vector<8x32xf32>
    %75 = arith.addf %73, %74 : vector<8x32xf32>
    %76 = math.tanh %75 : vector<8x32xf32>
    %77 = arith.mulf %72, %76 : vector<8x32xf32>
    %78 = vector.extract_strided_slice %5 {offsets = [24, 0], sizes = [8, 128], strides = [1, 1]} : vector<64x128xf32> to vector<8x128xf32>
    %cst_16 = arith.constant dense<0.000000e+00> : vector<8x128xf32>
    %79 = tpu.matmul %77, %18, %cst_16 {dimension_numbers = #tpu.dot_dimension_numbers<[1], [0], [0], [1], [0, 0, 1, 1], [], []>} : vector<8x32xf32>, vector<32x128xf32>, vector<8x128xf32> -> vector<8x128xf32>
    %80 = arith.addf %78, %79 : vector<8x128xf32>
    %81 = vector.broadcast %14 : vector<1x128xf32> to vector<8x128xf32>
    %82 = arith.mulf %80, %81 : vector<8x128xf32>
    %83 = math.tanh %82 : vector<8x128xf32>
    %84 = vector.broadcast %14 : vector<1x128xf32> to vector<8x128xf32>
    %85 = arith.mulf %83, %84 : vector<8x128xf32>
    %86 = vector.broadcast %17 : vector<1x128xf32> to vector<8x128xf32>
    %87 = arith.addf %85, %86 : vector<8x128xf32>
    %88 = vector.extract_strided_slice %87 {offsets = [0, 0], sizes = [8, 32], strides = [1, 1]} : vector<8x128xf32> to vector<8x32xf32>
    %89 = vector.extract_strided_slice %87 {offsets = [0, 32], sizes = [8, 32], strides = [1, 1]} : vector<8x128xf32> to vector<8x32xf32>
    %90 = vector.extract_strided_slice %87 {offsets = [0, 64], sizes = [8, 32], strides = [1, 1]} : vector<8x128xf32> to vector<8x32xf32>
    %91 = vector.extract_strided_slice %87 {offsets = [0, 96], sizes = [8, 32], strides = [1, 1]} : vector<8x128xf32> to vector<8x32xf32>
    %92 = arith.mulf %89, %75 : vector<8x32xf32>
    %93 = arith.mulf %88, %90 : vector<8x32xf32>
    %94 = arith.addf %92, %93 : vector<8x32xf32>
    %95 = math.tanh %94 : vector<8x32xf32>
    %96 = arith.mulf %91, %95 : vector<8x32xf32>
    %97 = vector.extract_strided_slice %5 {offsets = [32, 0], sizes = [8, 128], strides = [1, 1]} : vector<64x128xf32> to vector<8x128xf32>
    %cst_17 = arith.constant dense<0.000000e+00> : vector<8x128xf32>
    %98 = tpu.matmul %96, %18, %cst_17 {dimension_numbers = #tpu.dot_dimension_numbers<[1], [0], [0], [1], [0, 0, 1, 1], [], []>} : vector<8x32xf32>, vector<32x128xf32>, vector<8x128xf32> -> vector<8x128xf32>
    %99 = arith.addf %97, %98 : vector<8x128xf32>
    %100 = vector.broadcast %14 : vector<1x128xf32> to vector<8x128xf32>
    %101 = arith.mulf %99, %100 : vector<8x128xf32>
    %102 = math.tanh %101 : vector<8x128xf32>
    %103 = vector.broadcast %14 : vector<1x128xf32> to vector<8x128xf32>
    %104 = arith.mulf %102, %103 : vector<8x128xf32>
    %105 = vector.broadcast %17 : vector<1x128xf32> to vector<8x128xf32>
    %106 = arith.addf %104, %105 : vector<8x128xf32>
    %107 = vector.extract_strided_slice %106 {offsets = [0, 0], sizes = [8, 32], strides = [1, 1]} : vector<8x128xf32> to vector<8x32xf32>
    %108 = vector.extract_strided_slice %106 {offsets = [0, 32], sizes = [8, 32], strides = [1, 1]} : vector<8x128xf32> to vector<8x32xf32>
    %109 = vector.extract_strided_slice %106 {offsets = [0, 64], sizes = [8, 32], strides = [1, 1]} : vector<8x128xf32> to vector<8x32xf32>
    %110 = vector.extract_strided_slice %106 {offsets = [0, 96], sizes = [8, 32], strides = [1, 1]} : vector<8x128xf32> to vector<8x32xf32>
    %111 = arith.mulf %108, %94 : vector<8x32xf32>
    %112 = arith.mulf %107, %109 : vector<8x32xf32>
    %113 = arith.addf %111, %112 : vector<8x32xf32>
    %114 = math.tanh %113 : vector<8x32xf32>
    %115 = arith.mulf %110, %114 : vector<8x32xf32>
    %116 = vector.extract_strided_slice %5 {offsets = [40, 0], sizes = [8, 128], strides = [1, 1]} : vector<64x128xf32> to vector<8x128xf32>
    %cst_18 = arith.constant dense<0.000000e+00> : vector<8x128xf32>
    %117 = tpu.matmul %115, %18, %cst_18 {dimension_numbers = #tpu.dot_dimension_numbers<[1], [0], [0], [1], [0, 0, 1, 1], [], []>} : vector<8x32xf32>, vector<32x128xf32>, vector<8x128xf32> -> vector<8x128xf32>
    %118 = arith.addf %116, %117 : vector<8x128xf32>
    %119 = vector.broadcast %14 : vector<1x128xf32> to vector<8x128xf32>
    %120 = arith.mulf %118, %119 : vector<8x128xf32>
    %121 = math.tanh %120 : vector<8x128xf32>
    %122 = vector.broadcast %14 : vector<1x128xf32> to vector<8x128xf32>
    %123 = arith.mulf %121, %122 : vector<8x128xf32>
    %124 = vector.broadcast %17 : vector<1x128xf32> to vector<8x128xf32>
    %125 = arith.addf %123, %124 : vector<8x128xf32>
    %126 = vector.extract_strided_slice %125 {offsets = [0, 0], sizes = [8, 32], strides = [1, 1]} : vector<8x128xf32> to vector<8x32xf32>
    %127 = vector.extract_strided_slice %125 {offsets = [0, 32], sizes = [8, 32], strides = [1, 1]} : vector<8x128xf32> to vector<8x32xf32>
    %128 = vector.extract_strided_slice %125 {offsets = [0, 64], sizes = [8, 32], strides = [1, 1]} : vector<8x128xf32> to vector<8x32xf32>
    %129 = vector.extract_strided_slice %125 {offsets = [0, 96], sizes = [8, 32], strides = [1, 1]} : vector<8x128xf32> to vector<8x32xf32>
    %130 = arith.mulf %127, %113 : vector<8x32xf32>
    %131 = arith.mulf %126, %128 : vector<8x32xf32>
    %132 = arith.addf %130, %131 : vector<8x32xf32>
    %133 = math.tanh %132 : vector<8x32xf32>
    %134 = arith.mulf %129, %133 : vector<8x32xf32>
    %135 = vector.extract_strided_slice %5 {offsets = [48, 0], sizes = [8, 128], strides = [1, 1]} : vector<64x128xf32> to vector<8x128xf32>
    %cst_19 = arith.constant dense<0.000000e+00> : vector<8x128xf32>
    %136 = tpu.matmul %134, %18, %cst_19 {dimension_numbers = #tpu.dot_dimension_numbers<[1], [0], [0], [1], [0, 0, 1, 1], [], []>} : vector<8x32xf32>, vector<32x128xf32>, vector<8x128xf32> -> vector<8x128xf32>
    %137 = arith.addf %135, %136 : vector<8x128xf32>
    %138 = vector.broadcast %14 : vector<1x128xf32> to vector<8x128xf32>
    %139 = arith.mulf %137, %138 : vector<8x128xf32>
    %140 = math.tanh %139 : vector<8x128xf32>
    %141 = vector.broadcast %14 : vector<1x128xf32> to vector<8x128xf32>
    %142 = arith.mulf %140, %141 : vector<8x128xf32>
    %143 = vector.broadcast %17 : vector<1x128xf32> to vector<8x128xf32>
    %144 = arith.addf %142, %143 : vector<8x128xf32>
    %145 = vector.extract_strided_slice %144 {offsets = [0, 0], sizes = [8, 32], strides = [1, 1]} : vector<8x128xf32> to vector<8x32xf32>
    %146 = vector.extract_strided_slice %144 {offsets = [0, 32], sizes = [8, 32], strides = [1, 1]} : vector<8x128xf32> to vector<8x32xf32>
    %147 = vector.extract_strided_slice %144 {offsets = [0, 64], sizes = [8, 32], strides = [1, 1]} : vector<8x128xf32> to vector<8x32xf32>
    %148 = vector.extract_strided_slice %144 {offsets = [0, 96], sizes = [8, 32], strides = [1, 1]} : vector<8x128xf32> to vector<8x32xf32>
    %149 = arith.mulf %146, %132 : vector<8x32xf32>
    %150 = arith.mulf %145, %147 : vector<8x32xf32>
    %151 = arith.addf %149, %150 : vector<8x32xf32>
    %152 = math.tanh %151 : vector<8x32xf32>
    %153 = arith.mulf %148, %152 : vector<8x32xf32>
    %154 = vector.extract_strided_slice %5 {offsets = [56, 0], sizes = [8, 128], strides = [1, 1]} : vector<64x128xf32> to vector<8x128xf32>
    %cst_20 = arith.constant dense<0.000000e+00> : vector<8x128xf32>
    %155 = tpu.matmul %153, %18, %cst_20 {dimension_numbers = #tpu.dot_dimension_numbers<[1], [0], [0], [1], [0, 0, 1, 1], [], []>} : vector<8x32xf32>, vector<32x128xf32>, vector<8x128xf32> -> vector<8x128xf32>
    %156 = arith.addf %154, %155 : vector<8x128xf32>
    %157 = vector.broadcast %14 : vector<1x128xf32> to vector<8x128xf32>
    %158 = arith.mulf %156, %157 : vector<8x128xf32>
    %159 = math.tanh %158 : vector<8x128xf32>
    %160 = vector.broadcast %14 : vector<1x128xf32> to vector<8x128xf32>
    %161 = arith.mulf %159, %160 : vector<8x128xf32>
    %162 = vector.broadcast %17 : vector<1x128xf32> to vector<8x128xf32>
    %163 = arith.addf %161, %162 : vector<8x128xf32>
    %164 = vector.extract_strided_slice %163 {offsets = [0, 0], sizes = [8, 32], strides = [1, 1]} : vector<8x128xf32> to vector<8x32xf32>
    %165 = vector.extract_strided_slice %163 {offsets = [0, 32], sizes = [8, 32], strides = [1, 1]} : vector<8x128xf32> to vector<8x32xf32>
    %166 = vector.extract_strided_slice %163 {offsets = [0, 64], sizes = [8, 32], strides = [1, 1]} : vector<8x128xf32> to vector<8x32xf32>
    %167 = vector.extract_strided_slice %163 {offsets = [0, 96], sizes = [8, 32], strides = [1, 1]} : vector<8x128xf32> to vector<8x32xf32>
    %168 = arith.mulf %165, %151 : vector<8x32xf32>
    %169 = arith.mulf %164, %166 : vector<8x32xf32>
    %170 = arith.addf %168, %169 : vector<8x32xf32>
    %171 = math.tanh %170 : vector<8x32xf32>
    %172 = arith.mulf %167, %171 : vector<8x32xf32>
    %c0_21 = arith.constant 0 : index
    %c0_22 = arith.constant 0 : index
    %173 = vector.load %arg5[%c0_21, %c0_22] : memref<32x8xf32, #tpu.memory_space<vmem>>, vector<32x8xf32>
    %cst_23 = arith.constant dense<0.000000e+00> : vector<8x8xf32>
    %174 = tpu.matmul %172, %173, %cst_23 {dimension_numbers = #tpu.dot_dimension_numbers<[1], [0], [0], [1], [0, 0, 1, 1], [], []>} : vector<8x32xf32>, vector<32x8xf32>, vector<8x8xf32> -> vector<8x8xf32>
    %c0_24 = arith.constant 0 : index
    %c0_25 = arith.constant 0 : index
    %175 = vector.load %arg6[%c0_24, %c0_25] : memref<1x8xf32, #tpu.memory_space<vmem>>, vector<1x8xf32>
    %176 = vector.broadcast %175 : vector<1x8xf32> to vector<8x8xf32>
    %177 = arith.addf %174, %176 : vector<8x8xf32>
    %c0_26 = arith.constant 0 : index
    %c0_27 = arith.constant 0 : index
    %178 = vector.load %arg7[%c0_26, %c0_27] : memref<8x8xf32, #tpu.memory_space<vmem>>, vector<8x8xf32>
    tpu.vector_store %arg7[%c0_26, %c0_27], %177 {strides = array<i32>} : memref<8x8xf32, #tpu.memory_space<vmem>>, vector<8x8xf32>,
    return
  }
  func.func @transform_0(%arg0: i32) -> (i32, i32) {
    %c0_i32 = arith.constant 0 : i32
    %c0_i32_0 = arith.constant 0 : i32
    %c0_i32_1 = arith.constant 0 : i32
    return %c0_i32, %c0_i32_0 : i32, i32
  }
  func.func @transform_1(%arg0: i32) -> (i32, i32) {
    %c0_i32 = arith.constant 0 : i32
    %c0_i32_0 = arith.constant 0 : i32
    %c0_i32_1 = arith.constant 0 : i32
    return %c0_i32, %c0_i32_0 : i32, i32
  }
  func.func @transform_2(%arg0: i32) -> (i32, i32) {
    %c0_i32 = arith.constant 0 : i32
    %c0_i32_0 = arith.constant 0 : i32
    %c0_i32_1 = arith.constant 0 : i32
    return %c0_i32, %c0_i32_0 : i32, i32
  }
  func.func @transform_3(%arg0: i32) -> (i32, i32) {
    %c0_i32 = arith.constant 0 : i32
    %c0_i32_0 = arith.constant 0 : i32
    %c0_i32_1 = arith.constant 0 : i32
    return %c0_i32, %c0_i32_0 : i32, i32
  }
  func.func @transform_4(%arg0: i32) -> (i32, i32) {
    %c0_i32 = arith.constant 0 : i32
    %c0_i32_0 = arith.constant 0 : i32
    %c0_i32_1 = arith.constant 0 : i32
    return %c0_i32, %c0_i32_0 : i32, i32
  }
  func.func @transform_5(%arg0: i32) -> (i32, i32) {
    %c0_i32 = arith.constant 0 : i32
    %c0_i32_0 = arith.constant 0 : i32
    %c0_i32_1 = arith.constant 0 : i32
    return %c0_i32, %c0_i32_0 : i32, i32
  }
  func.func @transform_6(%arg0: i32) -> (i32, i32) {
    %c0_i32 = arith.constant 0 : i32
    %c0_i32_0 = arith.constant 0 : i32
    %c0_i32_1 = arith.constant 0 : i32
    return %c0_i32, %c0_i32_0 : i32, i32
  }
}

</mosaic_0001>

<llo_original>
// kernel: tpu_custom_call.1
$region0: #{tpu_custom_call.1}
  #allocation0 [shape = 'u32[]', space=smem, size = 0x4, offset = 0x4, fixed_abs, tag = 'smem constant byte address 0x4 - core index']
  #allocation1 [shape = 'u32[144,128]{1,0:T(1,128)}', space=vmem, size = 0x12000, scoped, tag = 'internal scratch']
  %s0 = inlined_call_operand.vmem [shape: f32[64,16], index: 0, kind: input, shape index: {}]
  %s1 = inlined_call_operand.vmem [shape: f32[16,128], index: 1, kind: input, shape index: {}]
  %s2 = inlined_call_operand.vmem [shape: f32[1,128], index: 2, kind: input, shape index: {}]
  %s3 = inlined_call_operand.vmem [shape: f32[32,128], index: 3, kind: input, shape index: {}]
  %s4 = inlined_call_operand.vmem [shape: f32[32,8], index: 4, kind: input, shape index: {}]
  %s5 = inlined_call_operand.vmem [shape: f32[1,8], index: 5, kind: input, shape index: {}]
  %s6 = inlined_call_operand.hbm [shape: f32[8,8], index: 6, kind: output, shape index: {}]
  %s7 = sld [smem:[#allocation0]]
  $region34: #{tpu_custom_call.1} parent=0
    _
  %s9 = ssub.s32 1, %s7
  %s10 = scalar_select 0, %s9, %s7
  $region1: #{tpu_custom_call.1} parent=0
    #allocation2 [shape = 'u8[4096]{0}', space=vmem, size = 0x1000, scoped, tag = 'output window, operand 0, single buffered']
    #allocation3 [shape = 's32[1]{0}', space=sflag, size = 0x4, scoped, tag = 'scoped memory for tpu_custom_call.1']
    %11 = vsyncpa [#allocation3], 0
    // Predicated region
    $region2: #{tpu_custom_call.1} parent=1 // pred_check
      _
    $region3: #{tpu_custom_call.1} parent=1 // pred_check_branch
      %13 = sbr.rel (0) target = $region5
    $region4: #{tpu_custom_call.1} parent=1 // pred_region
      _
    $region5: #{tpu_custom_call.1} parent=1 // pred_fallthru
      _
    // Predicated region
    $region6: #{tpu_custom_call.1} parent=1 // pred_check
      _
    $region7: #{tpu_custom_call.1} parent=1 // pred_check_branch
      %15 = sbr.rel (0) target = $region9
    $region8: #{tpu_custom_call.1} parent=1 // pred_region
      _
    $region9: #{tpu_custom_call.1} parent=1 // pred_fallthru
      _
    // Predicated region
    $region10: #{tpu_custom_call.1} parent=1 // pred_check
      _
    $region11: #{tpu_custom_call.1} parent=1 // pred_check_branch
      %17 = sbr.rel (0) target = $region13
    $region12: #{tpu_custom_call.1} parent=1 // pred_region
      _
    $region13: #{tpu_custom_call.1} parent=1 // pred_fallthru
      _
    // Predicated region
    $region14: #{tpu_custom_call.1} parent=1 // pred_check
      _
    $region15: #{tpu_custom_call.1} parent=1 // pred_check_branch
      %19 = sbr.rel (0) target = $region17
    $region16: #{tpu_custom_call.1} parent=1 // pred_region
      _
    $region17: #{tpu_custom_call.1} parent=1 // pred_fallthru
      _
    // Predicated region
    $region18: #{tpu_custom_call.1} parent=1 // pred_check
      _
    $region19: #{tpu_custom_call.1} parent=1 // pred_check_branch
      %21 = sbr.rel (0) target = $region21
    $region20: #{tpu_custom_call.1} parent=1 // pred_region
      _
    $region21: #{tpu_custom_call.1} parent=1 // pred_fallthru
      _
    // Predicated region
    $region22: #{tpu_custom_call.1} parent=1 // pred_check
      _
    $region23: #{tpu_custom_call.1} parent=1 // pred_check_branch
      %23 = sbr.rel (0) target = $region25
    $region24: #{tpu_custom_call.1} parent=1 // pred_region
      _
    $region25: #{tpu_custom_call.1} parent=1 // pred_fallthru
      _
    %v24 = vld [vmem:[%s0] sm:$0xff]
    %v25 = vld [vmem:[%s0 + $0x8] sm:$0xff]
    %v26 = vld [vmem:[%s0 + $0x10] sm:$0xff]
    %v27 = vld [vmem:[%s0 + $0x18] sm:$0xff]
    %v28 = vld [vmem:[%s0 + $0x20] sm:$0xff]
    %v29 = vld [vmem:[%s0 + $0x28] sm:$0xff]
    %v30 = vld [vmem:[%s0 + $0x30] sm:$0xff]
    %v31 = vld [vmem:[%s0 + $0x38] sm:$0xff]
    %v32 = vld [vmem:[%s1] sm:$0xff]
    %v33 = vld [vmem:[%s1 + $0x8] sm:$0xff]
    %v34 = vld [vmem:[%s2] sm:$0x1]
    %v36 = vlaneseq
    %v37 = vshrl.u32 %v36, 7
    %v38 = vsub.s32 0, %v37
    %v39 = vrot.slane %v34, %v38
    %vm41 = vcmask 130048
    %v43 = vsel %vm41, %v24, 0
    %v46 = vsel %vm41, %v25, 0
    %v49 = vsel %vm41, %v26, 0
    %v52 = vsel %vm41, %v27, 0
    %v55 = vsel %vm41, %v28, 0
    %v58 = vsel %vm41, %v29, 0
    %v61 = vsel %vm41, %v30, 0
    %v64 = vsel %vm41, %v31, 0
    %66 = vmatprep.subr.mxu0 0.0
    %67 = vmatpush1.msra.mxu0 0.0
    %68 = vmatprep.subr.mxu0 0.0
    %69 = vmatpush1.msra.mxu0 0.0
    %70 = vmatprep.subr.mxu0 0.0
    %71 = vmatpush1.msra.mxu0 0.0
    %72 = vmatprep.subr.mxu0 0.0
    %73 = vmatpush1.msra.mxu0 0.0
    %74 = vmatprep.subr.mxu0 0.0
    %75 = vmatpush1.msra.mxu0 0.0
    %76 = vmatprep.subr.mxu0 0.0
    %77 = vmatpush1.msra.mxu0 0.0
    %78 = vmatprep.subr.mxu0 0.0
    %79 = vmatpush1.msra.mxu0 0.0
    %80 = vmatprep.subr.mxu0 0.0
    %81 = vmatpush1.msra.mxu0 0.0
    %82 = vmatprep.subr.mxu0 0.0
    %83 = vmatpush1.msra.mxu0 0.0
    %84 = vmatprep.subr.mxu0 0.0
    %85 = vmatpush1.msra.mxu0 0.0
    %86 = vmatprep.subr.mxu0 0.0
    %87 = vmatpush1.msra.mxu0 0.0
    %88 = vmatprep.subr.mxu0 0.0
    %89 = vmatpush1.msra.mxu0 0.0
    %90 = vmatprep.subr.mxu0 0.0
    %91 = vmatpush1.msra.mxu0 0.0
    %92 = vmatprep.subr.mxu0 0.0
    %93 = vmatpush1.msra.mxu0 0.0
    %94 = vmatprep.subr.mxu0 0.0
    %95 = vmatpush1.msra.mxu0 %v33
    %96 = vmatprep.subr.mxu0 0.0
    %97 = vmatpush1.msra.mxu0 %v32
    %98 = vmatprep.subr.mxu0 0.0
    %99 = vmatpush2.msra.mxu0 0.0
    %100 = vmatprep.subr.mxu0 0.0
    %101 = vmatpush2.msra.mxu0 0.0
    %102 = vmatprep.subr.mxu0 0.0
    %103 = vmatpush2.msra.mxu0 0.0
    %104 = vmatprep.subr.mxu0 0.0
    %105 = vmatpush2.msra.mxu0 0.0
    %106 = vmatprep.subr.mxu0 0.0
    %107 = vmatpush2.msra.mxu0 0.0
    %108 = vmatprep.subr.mxu0 0.0
    %109 = vmatpush2.msra.mxu0 0.0
    %110 = vmatprep.subr.mxu0 0.0
    %111 = vmatpush2.msra.mxu0 0.0
    %112 = vmatprep.subr.mxu0 0.0
    %113 = vmatpush2.msra.mxu0 0.0
    %114 = vmatprep.subr.mxu0 0.0
    %115 = vmatpush2.msra.mxu0 0.0
    %116 = vmatprep.subr.mxu0 0.0
    %117 = vmatpush2.msra.mxu0 0.0
    %118 = vmatprep.subr.mxu0 0.0
    %119 = vmatpush2.msra.mxu0 0.0
    %120 = vmatprep.subr.mxu0 0.0
    %121 = vmatpush2.msra.mxu0 0.0
    %122 = vmatprep.subr.mxu0 0.0
    %123 = vmatpush2.msra.mxu0 0.0
    %124 = vmatprep.subr.mxu0 0.0
    %125 = vmatpush2.msra.mxu0 0.0
    %126 = vmatprep.subr.mxu0 0.0
    %127 = vmatpush2.msra.mxu0 0.0
    %128 = vmatprep.subr.mxu0 0.0
    %129 = vmatpush2.msra.mxu0 0.0
    %130 = vmatprep.mubr.f32.mxu0 0.0
    %131 = vmatmul.mubr.f32.gmra.mxu0 %v43
    %v132 = vpop.f32.mrf.mxu0
    %v133 = vadd.f32 %v39, %v132
    %v134 = vpop.f32.mrf.mxu0
    %135 = vmatprep.mubr.f32.mxu0 0.0
    %136 = vmatmul.mubr.f32.gmra.mxu0 %v46
    %v137 = vpop.f32.mrf.mxu0
    %v138 = vadd.f32 %v39, %v137
    %v139 = vpop.f32.mrf.mxu0
    %140 = vmatprep.mubr.f32.mxu0 0.0
    %141 = vmatmul.mubr.f32.gmra.mxu0 %v49
    %v142 = vpop.f32.mrf.mxu0
    %v143 = vadd.f32 %v39, %v142
    %v144 = vpop.f32.mrf.mxu0
    %145 = vmatprep.mubr.f32.mxu0 0.0
    %146 = vmatmul.mubr.f32.gmra.mxu0 %v52
    %v147 = vpop.f32.mrf.mxu0
    %v148 = vadd.f32 %v39, %v147
    %v149 = vpop.f32.mrf.mxu0
    %150 = vmatprep.mubr.f32.mxu0 0.0
    %151 = vmatmul.mubr.f32.gmra.mxu0 %v55
    %v152 = vpop.f32.mrf.mxu0
    %v153 = vadd.f32 %v39, %v152
    %v154 = vpop.f32.mrf.mxu0
    %155 = vmatprep.mubr.f32.mxu0 0.0
    %156 = vmatmul.mubr.f32.gmra.mxu0 %v58
    %v157 = vpop.f32.mrf.mxu0
    %v158 = vadd.f32 %v39, %v157
    %v159 = vpop.f32.mrf.mxu0
    %160 = vmatprep.mubr.f32.mxu0 0.0
    %161 = vmatmul.mubr.f32.gmra.mxu0 %v61
    %v162 = vpop.f32.mrf.mxu0
    %v163 = vadd.f32 %v39, %v162
    %v164 = vpop.f32.mrf.mxu0
    %165 = vmatprep.mubr.f32.mxu0 0.0
    %166 = vmatmul.mubr.f32.gmra.mxu0 %v64
    %v167 = vpop.f32.mrf.mxu0
    %v168 = vadd.f32 %v39, %v167
    %v169 = vpop.f32.mrf.mxu0
    %170 = vdwg.mxu0
    %v171 = vlaneseq
    %v172 = vand.u32 %v171, 127
    %vm173 = vcmp.ge.s32.totalorder %v172, 64
    %vm174 = vcmp.lt.s32.totalorder %v172, 96
    %vm175 = vmand %vm173, %vm174
    %v176 = vsel %vm175, 1.0, 0.5
    %v177 = vsel %vm175, 0.0, 0.5
    %v178 = vld [vmem:[%s3] sm:$0xff]
    %v179 = vld [vmem:[%s3 + $0x8] sm:$0xff]
    %v180 = vld [vmem:[%s3 + $0x10] sm:$0xff]
    %v181 = vld [vmem:[%s3 + $0x18] sm:$0xff]
    %vm182 = vcmask 261120
    %v184 = vsel %vm182, 0.0, 0
    %186 = vmatprep.subr.mxu0 0.0
    %187 = vmatpush1.msra.mxu0 0.0
    %188 = vmatprep.subr.mxu0 0.0
    %189 = vmatpush1.msra.mxu0 0.0
    %190 = vmatprep.subr.mxu0 0.0
    %191 = vmatpush1.msra.mxu0 0.0
    %192 = vmatprep.subr.mxu0 0.0
    %193 = vmatpush1.msra.mxu0 0.0
    %194 = vmatprep.subr.mxu0 0.0
    %195 = vmatpush1.msra.mxu0 0.0
    %196 = vmatprep.subr.mxu0 0.0
    %197 = vmatpush1.msra.mxu0 0.0
    %198 = vmatprep.subr.mxu0 0.0
    %199 = vmatpush1.msra.mxu0 0.0
    %200 = vmatprep.subr.mxu0 0.0
    %201 = vmatpush1.msra.mxu0 0.0
    %202 = vmatprep.subr.mxu0 0.0
    %203 = vmatpush1.msra.mxu0 0.0
    %204 = vmatprep.subr.mxu0 0.0
    %205 = vmatpush1.msra.mxu0 0.0
    %206 = vmatprep.subr.mxu0 0.0
    %207 = vmatpush1.msra.mxu0 0.0
    %208 = vmatprep.subr.mxu0 0.0
    %209 = vmatpush1.msra.mxu0 0.0
    %210 = vmatprep.subr.mxu0 0.0
    %211 = vmatpush1.msra.mxu0 %v181
    %212 = vmatprep.subr.mxu0 0.0
    %213 = vmatpush1.msra.mxu0 %v180
    %214 = vmatprep.subr.mxu0 0.0
    %215 = vmatpush1.msra.mxu0 %v179
    %216 = vmatprep.subr.mxu0 0.0
    %217 = vmatpush1.msra.mxu0 %v178
    %218 = vmatprep.subr.mxu0 0.0
    %219 = vmatpush2.msra.mxu0 0.0
    %220 = vmatprep.subr.mxu0 0.0
    %221 = vmatpush2.msra.mxu0 0.0
    %222 = vmatprep.subr.mxu0 0.0
    %223 = vmatpush2.msra.mxu0 0.0
    %224 = vmatprep.subr.mxu0 0.0
    %225 = vmatpush2.msra.mxu0 0.0
    %226 = vmatprep.subr.mxu0 0.0
    %227 = vmatpush2.msra.mxu0 0.0
    %228 = vmatprep.subr.mxu0 0.0
    %229 = vmatpush2.msra.mxu0 0.0
    %230 = vmatprep.subr.mxu0 0.0
    %231 = vmatpush2.msra.mxu0 0.0
    %232 = vmatprep.subr.mxu0 0.0
    %233 = vmatpush2.msra.mxu0 0.0
    %234 = vmatprep.subr.mxu0 0.0
    %235 = vmatpush2.msra.mxu0 0.0
    %236 = vmatprep.subr.mxu0 0.0
    %237 = vmatpush2.msra.mxu0 0.0
    %238 = vmatprep.subr.mxu0 0.0
    %239 = vmatpush2.msra.mxu0 0.0
    %240 = vmatprep.subr.mxu0 0.0
    %241 = vmatpush2.msra.mxu0 0.0
    %242 = vmatprep.subr.mxu0 0.0
    %243 = vmatpush2.msra.mxu0 0.0
    %244 = vmatprep.subr.mxu0 0.0
    %245 = vmatpush2.msra.mxu0 0.0
    %246 = vmatprep.subr.mxu0 0.0
    %247 = vmatpush2.msra.mxu0 0.0
    %248 = vmatprep.subr.mxu0 0.0
    %249 = vmatpush2.msra.mxu0 0.0
    %250 = vmatprep.mubr.f32.mxu0 0.0
    %251 = vmatmul.mubr.f32.gmra.mxu0 %v184
    %v252 = vpop.f32.mrf.mxu0
    %v253 = vadd.f32 0.0, %v252
    %v254 = vpop.f32.mrf.mxu0
    %255 = vdwg.mxu0
    %v256 = vadd.f32 %v133, %v253
    %v257 = vmul.f32 %v256, %v176
    %v258 = vtanh.pop %v257
    %v259 = vmul.f32 %v258, %v176
    %v260 = vadd.f32 %v259, %v177
    %v261 = vmul.f32 %v260, 0.0
    %263 = vrot.lane.b32.xlu0 %v260, 64
    %v264 = vpop.permute.xlu0 %263
    %v266 = vmul.f32 %v260, %v264
    %268 = vrot.lane.b32.xlu0 %v266, 32
    %v269 = vpop.permute.xlu0 %268
    %v271 = vadd.f32 %v261, %v269
    %v272 = vtanh.pop %v271
    %274 = vrot.lane.b32.xlu0 %v272, 64
    %v275 = vpop.permute.xlu0 %274
    %v277 = vmul.f32 %v260, %v275
    %279 = vrot.lane.b32.xlu0 %v277, 32
    %v280 = vpop.permute.xlu0 %279
    %v281 = vsel %vm182, %v280, 0
    %283 = vmatprep.subr.mxu0 0.0
    %284 = vmatpush1.msra.mxu0 0.0
    %285 = vmatprep.subr.mxu0 0.0
    %286 = vmatpush1.msra.mxu0 0.0
    %287 = vmatprep.subr.mxu0 0.0
    %288 = vmatpush1.msra.mxu0 0.0
    %289 = vmatprep.subr.mxu0 0.0
    %290 = vmatpush1.msra.mxu0 0.0
    %291 = vmatprep.subr.mxu0 0.0
    %292 = vmatpush1.msra.mxu0 0.0
    %293 = vmatprep.subr.mxu0 0.0
    %294 = vmatpush1.msra.mxu0 0.0
    %295 = vmatprep.subr.mxu0 0.0
    %296 = vmatpush1.msra.mxu0 0.0
    %297 = vmatprep.subr.mxu0 0.0
    %298 = vmatpush1.msra.mxu0 0.0
    %299 = vmatprep.subr.mxu0 0.0
    %300 = vmatpush1.msra.mxu0 0.0
    %301 = vmatprep.subr.mxu0 0.0
    %302 = vmatpush1.msra.mxu0 0.0
    %303 = vmatprep.subr.mxu0 0.0
    %304 = vmatpush1.msra.mxu0 0.0
    %305 = vmatprep.subr.mxu0 0.0
    %306 = vmatpush1.msra.mxu0 0.0
    %307 = vmatprep.subr.mxu0 0.0
    %308 = vmatpush1.msra.mxu0 %v181
    %309 = vmatprep.subr.mxu0 0.0
    %310 = vmatpush1.msra.mxu0 %v180
    %311 = vmatprep.subr.mxu0 0.0
    %312 = vmatpush1.msra.mxu0 %v179
    %313 = vmatprep.subr.mxu0 0.0
    %314 = vmatpush1.msra.mxu0 %v178
    %315 = vmatprep.subr.mxu0 0.0
    %316 = vmatpush2.msra.mxu0 0.0
    %317 = vmatprep.subr.mxu0 0.0
    %318 = vmatpush2.msra.mxu0 0.0
    %319 = vmatprep.subr.mxu0 0.0
    %320 = vmatpush2.msra.mxu0 0.0
    %321 = vmatprep.subr.mxu0 0.0
    %322 = vmatpush2.msra.mxu0 0.0
    %323 = vmatprep.subr.mxu0 0.0
    %324 = vmatpush2.msra.mxu0 0.0
    %325 = vmatprep.subr.mxu0 0.0
    %326 = vmatpush2.msra.mxu0 0.0
    %327 = vmatprep.subr.mxu0 0.0
    %328 = vmatpush2.msra.mxu0 0.0
    %329 = vmatprep.subr.mxu0 0.0
    %330 = vmatpush2.msra.mxu0 0.0
    %331 = vmatprep.subr.mxu0 0.0
    %332 = vmatpush2.msra.mxu0 0.0
    %333 = vmatprep.subr.mxu0 0.0
    %334 = vmatpush2.msra.mxu0 0.0
    %335 = vmatprep.subr.mxu0 0.0
    %336 = vmatpush2.msra.mxu0 0.0
    %337 = vmatprep.subr.mxu0 0.0
    %338 = vmatpush2.msra.mxu0 0.0
    %339 = vmatprep.subr.mxu0 0.0
    %340 = vmatpush2.msra.mxu0 0.0
    %341 = vmatprep.subr.mxu0 0.0
    %342 = vmatpush2.msra.mxu0 0.0
    %343 = vmatprep.subr.mxu0 0.0
    %344 = vmatpush2.msra.mxu0 0.0
    %345 = vmatprep.subr.mxu0 0.0
    %346 = vmatpush2.msra.mxu0 0.0
    %347 = vmatprep.mubr.f32.mxu0 0.0
    %348 = vmatmul.mubr.f32.gmra.mxu0 %v281
    %v349 = vpop.f32.mrf.mxu0
    %v350 = vadd.f32 0.0, %v349
    %v351 = vpop.f32.mrf.mxu0
    %352 = vdwg.mxu0
    %v353 = vadd.f32 %v138, %v350
    %v354 = vmul.f32 %v353, %v176
    %v355 = vtanh.pop %v354
    %v356 = vmul.f32 %v355, %v176
    %v357 = vadd.f32 %v356, %v177
    %v358 = vmul.f32 %v357, %v271
    %360 = vrot.lane.b32.xlu0 %v357, 64
    %v361 = vpop.permute.xlu0 %360
    %v363 = vmul.f32 %v357, %v361
    %365 = vrot.lane.b32.xlu0 %v363, 32
    %v366 = vpop.permute.xlu0 %365
    %v368 = vadd.f32 %v358, %v366
    %v369 = vtanh.pop %v368
    %371 = vrot.lane.b32.xlu0 %v369, 64
    %v372 = vpop.permute.xlu0 %371
    %v374 = vmul.f32 %v357, %v372
    %376 = vrot.lane.b32.xlu0 %v374, 32
    %v377 = vpop.permute.xlu0 %376
    %v378 = vsel %vm182, %v377, 0
    %380 = vmatprep.subr.mxu0 0.0
    %381 = vmatpush1.msra.mxu0 0.0
    %382 = vmatprep.subr.mxu0 0.0
    %383 = vmatpush1.msra.mxu0 0.0
    %384 = vmatprep.subr.mxu0 0.0
    %385 = vmatpush1.msra.mxu0 0.0
    %386 = vmatprep.subr.mxu0 0.0
    %387 = vmatpush1.msra.mxu0 0.0
    %388 = vmatprep.subr.mxu0 0.0
    %389 = vmatpush1.msra.mxu0 0.0
    %390 = vmatprep.subr.mxu0 0.0
    %391 = vmatpush1.msra.mxu0 0.0
    %392 = vmatprep.subr.mxu0 0.0
    %393 = vmatpush1.msra.mxu0 0.0
    %394 = vmatprep.subr.mxu0 0.0
    %395 = vmatpush1.msra.mxu0 0.0
    %396 = vmatprep.subr.mxu0 0.0
    %397 = vmatpush1.msra.mxu0 0.0
    %398 = vmatprep.subr.mxu0 0.0
    %399 = vmatpush1.msra.mxu0 0.0
    %400 = vmatprep.subr.mxu0 0.0
    %401 = vmatpush1.msra.mxu0 0.0
    %402 = vmatprep.subr.mxu0 0.0
    %403 = vmatpush1.msra.mxu0 0.0
    %404 = vmatprep.subr.mxu0 0.0
    %405 = vmatpush1.msra.mxu0 %v181
    %406 = vmatprep.subr.mxu0 0.0
    %407 = vmatpush1.msra.mxu0 %v180
    %408 = vmatprep.subr.mxu0 0.0
    %409 = vmatpush1.msra.mxu0 %v179
    %410 = vmatprep.subr.mxu0 0.0
    %411 = vmatpush1.msra.mxu0 %v178
    %412 = vmatprep.subr.mxu0 0.0
    %413 = vmatpush2.msra.mxu0 0.0
    %414 = vmatprep.subr.mxu0 0.0
    %415 = vmatpush2.msra.mxu0 0.0
    %416 = vmatprep.subr.mxu0 0.0
    %417 = vmatpush2.msra.mxu0 0.0
    %418 = vmatprep.subr.mxu0 0.0
    %419 = vmatpush2.msra.mxu0 0.0
    %420 = vmatprep.subr.mxu0 0.0
    %421 = vmatpush2.msra.mxu0 0.0
    %422 = vmatprep.subr.mxu0 0.0
    %423 = vmatpush2.msra.mxu0 0.0
    %424 = vmatprep.subr.mxu0 0.0
    %425 = vmatpush2.msra.mxu0 0.0
    %426 = vmatprep.subr.mxu0 0.0
    %427 = vmatpush2.msra.mxu0 0.0
    %428 = vmatprep.subr.mxu0 0.0
    %429 = vmatpush2.msra.mxu0 0.0
    %430 = vmatprep.subr.mxu0 0.0
    %431 = vmatpush2.msra.mxu0 0.0
    %432 = vmatprep.subr.mxu0 0.0
    %433 = vmatpush2.msra.mxu0 0.0
    %434 = vmatprep.subr.mxu0 0.0
    %435 = vmatpush2.msra.mxu0 0.0
    %436 = vmatprep.subr.mxu0 0.0
    %437 = vmatpush2.msra.mxu0 0.0
    %438 = vmatprep.subr.mxu0 0.0
    %439 = vmatpush2.msra.mxu0 0.0
    %440 = vmatprep.subr.mxu0 0.0
    %441 = vmatpush2.msra.mxu0 0.0
    %442 = vmatprep.subr.mxu0 0.0
    %443 = vmatpush2.msra.mxu0 0.0
    %444 = vmatprep.mubr.f32.mxu0 0.0
    %445 = vmatmul.mubr.f32.gmra.mxu0 %v378
    %v446 = vpop.f32.mrf.mxu0
    %v447 = vadd.f32 0.0, %v446
    %v448 = vpop.f32.mrf.mxu0
    %449 = vdwg.mxu0
    %v450 = vadd.f32 %v143, %v447
    %v451 = vmul.f32 %v450, %v176
    %v452 = vtanh.pop %v451
    %v453 = vmul.f32 %v452, %v176
    %v454 = vadd.f32 %v453, %v177
    %v455 = vmul.f32 %v454, %v368
    %457 = vrot.lane.b32.xlu0 %v454, 64
    %v458 = vpop.permute.xlu0 %457
    %v460 = vmul.f32 %v454, %v458
    %462 = vrot.lane.b32.xlu0 %v460, 32
    %v463 = vpop.permute.xlu0 %462
    %v465 = vadd.f32 %v455, %v463
    %v466 = vtanh.pop %v465
    %468 = vrot.lane.b32.xlu0 %v466, 64
    %v469 = vpop.permute.xlu0 %468
    %v471 = vmul.f32 %v454, %v469
    %473 = vrot.lane.b32.xlu0 %v471, 32
    %v474 = vpop.permute.xlu0 %473
    %v475 = vsel %vm182, %v474, 0
    %477 = vmatprep.subr.mxu0 0.0
    %478 = vmatpush1.msra.mxu0 0.0
    %479 = vmatprep.subr.mxu0 0.0
    %480 = vmatpush1.msra.mxu0 0.0
    %481 = vmatprep.subr.mxu0 0.0
    %482 = vmatpush1.msra.mxu0 0.0
    %483 = vmatprep.subr.mxu0 0.0
    %484 = vmatpush1.msra.mxu0 0.0
    %485 = vmatprep.subr.mxu0 0.0
    %486 = vmatpush1.msra.mxu0 0.0
    %487 = vmatprep.subr.mxu0 0.0
    %488 = vmatpush1.msra.mxu0 0.0
    %489 = vmatprep.subr.mxu0 0.0
    %490 = vmatpush1.msra.mxu0 0.0
    %491 = vmatprep.subr.mxu0 0.0
    %492 = vmatpush1.msra.mxu0 0.0
    %493 = vmatprep.subr.mxu0 0.0
    %494 = vmatpush1.msra.mxu0 0.0
    %495 = vmatprep.subr.mxu0 0.0
    %496 = vmatpush1.msra.mxu0 0.0
    %497 = vmatprep.subr.mxu0 0.0
    %498 = vmatpush1.msra.mxu0 0.0
    %499 = vmatprep.subr.mxu0 0.0
    %500 = vmatpush1.msra.mxu0 0.0
    %501 = vmatprep.subr.mxu0 0.0
    %502 = vmatpush1.msra.mxu0 %v181
    %503 = vmatprep.subr.mxu0 0.0
    %504 = vmatpush1.msra.mxu0 %v180
    %505 = vmatprep.subr.mxu0 0.0
    %506 = vmatpush1.msra.mxu0 %v179
    %507 = vmatprep.subr.mxu0 0.0
    %508 = vmatpush1.msra.mxu0 %v178
    %509 = vmatprep.subr.mxu0 0.0
    %510 = vmatpush2.msra.mxu0 0.0
    %511 = vmatprep.subr.mxu0 0.0
    %512 = vmatpush2.msra.mxu0 0.0
    %513 = vmatprep.subr.mxu0 0.0
    %514 = vmatpush2.msra.mxu0 0.0
    %515 = vmatprep.subr.mxu0 0.0
    %516 = vmatpush2.msra.mxu0 0.0
    %517 = vmatprep.subr.mxu0 0.0
    %518 = vmatpush2.msra.mxu0 0.0
    %519 = vmatprep.subr.mxu0 0.0
    %520 = vmatpush2.msra.mxu0 0.0
    %521 = vmatprep.subr.mxu0 0.0
    %522 = vmatpush2.msra.mxu0 0.0
    %523 = vmatprep.subr.mxu0 0.0
    %524 = vmatpush2.msra.mxu0 0.0
    %525 = vmatprep.subr.mxu0 0.0
    %526 = vmatpush2.msra.mxu0 0.0
    %527 = vmatprep.subr.mxu0 0.0
    %528 = vmatpush2.msra.mxu0 0.0
    %529 = vmatprep.subr.mxu0 0.0
    %530 = vmatpush2.msra.mxu0 0.0
    %531 = vmatprep.subr.mxu0 0.0
    %532 = vmatpush2.msra.mxu0 0.0
    %533 = vmatprep.subr.mxu0 0.0
    %534 = vmatpush2.msra.mxu0 0.0
    %535 = vmatprep.subr.mxu0 0.0
    %536 = vmatpush2.msra.mxu0 0.0
    %537 = vmatprep.subr.mxu0 0.0
    %538 = vmatpush2.msra.mxu0 0.0
    %539 = vmatprep.subr.mxu0 0.0
    %540 = vmatpush2.msra.mxu0 0.0
    %541 = vmatprep.mubr.f32.mxu0 0.0
    %542 = vmatmul.mubr.f32.gmra.mxu0 %v475
    %v543 = vpop.f32.mrf.mxu0
    %v544 = vadd.f32 0.0, %v543
    %v545 = vpop.f32.mrf.mxu0
    %546 = vdwg.mxu0
    %v547 = vadd.f32 %v148, %v544
    %v548 = vmul.f32 %v547, %v176
    %v549 = vtanh.pop %v548
    %v550 = vmul.f32 %v549, %v176
    %v551 = vadd.f32 %v550, %v177
    %v552 = vmul.f32 %v551, %v465
    %554 = vrot.lane.b32.xlu0 %v551, 64
    %v555 = vpop.permute.xlu0 %554
    %v557 = vmul.f32 %v551, %v555
    %559 = vrot.lane.b32.xlu0 %v557, 32
    %v560 = vpop.permute.xlu0 %559
    %v562 = vadd.f32 %v552, %v560
    %v563 = vtanh.pop %v562
    %565 = vrot.lane.b32.xlu0 %v563, 64
    %v566 = vpop.permute.xlu0 %565
    %v568 = vmul.f32 %v551, %v566
    %570 = vrot.lane.b32.xlu0 %v568, 32
    %v571 = vpop.permute.xlu0 %570
    %v572 = vsel %vm182, %v571, 0
    %574 = vmatprep.subr.mxu0 0.0
    %575 = vmatpush1.msra.mxu0 0.0
    %576 = vmatprep.subr.mxu0 0.0
    %577 = vmatpush1.msra.mxu0 0.0
    %578 = vmatprep.subr.mxu0 0.0
    %579 = vmatpush1.msra.mxu0 0.0
    %580 = vmatprep.subr.mxu0 0.0
    %581 = vmatpush1.msra.mxu0 0.0
    %582 = vmatprep.subr.mxu0 0.0
    %583 = vmatpush1.msra.mxu0 0.0
    %584 = vmatprep.subr.mxu0 0.0
    %585 = vmatpush1.msra.mxu0 0.0
    %586 = vmatprep.subr.mxu0 0.0
    %587 = vmatpush1.msra.mxu0 0.0
    %588 = vmatprep.subr.mxu0 0.0
    %589 = vmatpush1.msra.mxu0 0.0
    %590 = vmatprep.subr.mxu0 0.0
    %591 = vmatpush1.msra.mxu0 0.0
    %592 = vmatprep.subr.mxu0 0.0
    %593 = vmatpush1.msra.mxu0 0.0
    %594 = vmatprep.subr.mxu0 0.0
    %595 = vmatpush1.msra.mxu0 0.0
    %596 = vmatprep.subr.mxu0 0.0
    %597 = vmatpush1.msra.mxu0 0.0
    %598 = vmatprep.subr.mxu0 0.0
    %599 = vmatpush1.msra.mxu0 %v181
    %600 = vmatprep.subr.mxu0 0.0
    %601 = vmatpush1.msra.mxu0 %v180
    %602 = vmatprep.subr.mxu0 0.0
    %603 = vmatpush1.msra.mxu0 %v179
    %604 = vmatprep.subr.mxu0 0.0
    %605 = vmatpush1.msra.mxu0 %v178
    %606 = vmatprep.subr.mxu0 0.0
    %607 = vmatpush2.msra.mxu0 0.0
    %608 = vmatprep.subr.mxu0 0.0
    %609 = vmatpush2.msra.mxu0 0.0
    %610 = vmatprep.subr.mxu0 0.0
    %611 = vmatpush2.msra.mxu0 0.0
    %612 = vmatprep.subr.mxu0 0.0
    %613 = vmatpush2.msra.mxu0 0.0
    %614 = vmatprep.subr.mxu0 0.0
    %615 = vmatpush2.msra.mxu0 0.0
    %616 = vmatprep.subr.mxu0 0.0
    %617 = vmatpush2.msra.mxu0 0.0
    %618 = vmatprep.subr.mxu0 0.0
    %619 = vmatpush2.msra.mxu0 0.0
    %620 = vmatprep.subr.mxu0 0.0
    %621 = vmatpush2.msra.mxu0 0.0
    %622 = vmatprep.subr.mxu0 0.0
    %623 = vmatpush2.msra.mxu0 0.0
    %624 = vmatprep.subr.mxu0 0.0
    %625 = vmatpush2.msra.mxu0 0.0
    %626 = vmatprep.subr.mxu0 0.0
    %627 = vmatpush2.msra.mxu0 0.0
    %628 = vmatprep.subr.mxu0 0.0
    %629 = vmatpush2.msra.mxu0 0.0
    %630 = vmatprep.subr.mxu0 0.0
    %631 = vmatpush2.msra.mxu0 0.0
    %632 = vmatprep.subr.mxu0 0.0
    %633 = vmatpush2.msra.mxu0 0.0
    %634 = vmatprep.subr.mxu0 0.0
    %635 = vmatpush2.msra.mxu0 0.0
    %636 = vmatprep.subr.mxu0 0.0
    %637 = vmatpush2.msra.mxu0 0.0
    %638 = vmatprep.mubr.f32.mxu0 0.0
    %639 = vmatmul.mubr.f32.gmra.mxu0 %v572
    %v640 = vpop.f32.mrf.mxu0
    %v641 = vadd.f32 0.0, %v640
    %v642 = vpop.f32.mrf.mxu0
    %643 = vdwg.mxu0
    %v644 = vadd.f32 %v153, %v641
    %v645 = vmul.f32 %v644, %v176
    %v646 = vtanh.pop %v645
    %v647 = vmul.f32 %v646, %v176
    %v648 = vadd.f32 %v647, %v177
    %v649 = vmul.f32 %v648, %v562
    %651 = vrot.lane.b32.xlu0 %v648, 64
    %v652 = vpop.permute.xlu0 %651
    %v654 = vmul.f32 %v648, %v652
    %656 = vrot.lane.b32.xlu0 %v654, 32
    %v657 = vpop.permute.xlu0 %656
    %v659 = vadd.f32 %v649, %v657
    %v660 = vtanh.pop %v659
    %662 = vrot.lane.b32.xlu0 %v660, 64
    %v663 = vpop.permute.xlu0 %662
    %v665 = vmul.f32 %v648, %v663
    %667 = vrot.lane.b32.xlu0 %v665, 32
    %v668 = vpop.permute.xlu0 %667
    %v669 = vsel %vm182, %v668, 0
    %671 = vmatprep.subr.mxu0 0.0
    %672 = vmatpush1.msra.mxu0 0.0
    %673 = vmatprep.subr.mxu0 0.0
    %674 = vmatpush1.msra.mxu0 0.0
    %675 = vmatprep.subr.mxu0 0.0
    %676 = vmatpush1.msra.mxu0 0.0
    %677 = vmatprep.subr.mxu0 0.0
    %678 = vmatpush1.msra.mxu0 0.0
    %679 = vmatprep.subr.mxu0 0.0
    %680 = vmatpush1.msra.mxu0 0.0
    %681 = vmatprep.subr.mxu0 0.0
    %682 = vmatpush1.msra.mxu0 0.0
    %683 = vmatprep.subr.mxu0 0.0
    %684 = vmatpush1.msra.mxu0 0.0
    %685 = vmatprep.subr.mxu0 0.0
    %686 = vmatpush1.msra.mxu0 0.0
    %687 = vmatprep.subr.mxu0 0.0
    %688 = vmatpush1.msra.mxu0 0.0
    %689 = vmatprep.subr.mxu0 0.0
    %690 = vmatpush1.msra.mxu0 0.0
    %691 = vmatprep.subr.mxu0 0.0
    %692 = vmatpush1.msra.mxu0 0.0
    %693 = vmatprep.subr.mxu0 0.0
    %694 = vmatpush1.msra.mxu0 0.0
    %695 = vmatprep.subr.mxu0 0.0
    %696 = vmatpush1.msra.mxu0 %v181
    %697 = vmatprep.subr.mxu0 0.0
    %698 = vmatpush1.msra.mxu0 %v180
    %699 = vmatprep.subr.mxu0 0.0
    %700 = vmatpush1.msra.mxu0 %v179
    %701 = vmatprep.subr.mxu0 0.0
    %702 = vmatpush1.msra.mxu0 %v178
    %703 = vmatprep.subr.mxu0 0.0
    %704 = vmatpush2.msra.mxu0 0.0
    %705 = vmatprep.subr.mxu0 0.0
    %706 = vmatpush2.msra.mxu0 0.0
    %707 = vmatprep.subr.mxu0 0.0
    %708 = vmatpush2.msra.mxu0 0.0
    %709 = vmatprep.subr.mxu0 0.0
    %710 = vmatpush2.msra.mxu0 0.0
    %711 = vmatprep.subr.mxu0 0.0
    %712 = vmatpush2.msra.mxu0 0.0
    %713 = vmatprep.subr.mxu0 0.0
    %714 = vmatpush2.msra.mxu0 0.0
    %715 = vmatprep.subr.mxu0 0.0
    %716 = vmatpush2.msra.mxu0 0.0
    %717 = vmatprep.subr.mxu0 0.0
    %718 = vmatpush2.msra.mxu0 0.0
    %719 = vmatprep.subr.mxu0 0.0
    %720 = vmatpush2.msra.mxu0 0.0
    %721 = vmatprep.subr.mxu0 0.0
    %722 = vmatpush2.msra.mxu0 0.0
    %723 = vmatprep.subr.mxu0 0.0
    %724 = vmatpush2.msra.mxu0 0.0
    %725 = vmatprep.subr.mxu0 0.0
    %726 = vmatpush2.msra.mxu0 0.0
    %727 = vmatprep.subr.mxu0 0.0
    %728 = vmatpush2.msra.mxu0 0.0
    %729 = vmatprep.subr.mxu0 0.0
    %730 = vmatpush2.msra.mxu0 0.0
    %731 = vmatprep.subr.mxu0 0.0
    %732 = vmatpush2.msra.mxu0 0.0
    %733 = vmatprep.subr.mxu0 0.0
    %734 = vmatpush2.msra.mxu0 0.0
    %735 = vmatprep.mubr.f32.mxu0 0.0
    %736 = vmatmul.mubr.f32.gmra.mxu0 %v669
    %v737 = vpop.f32.mrf.mxu0
    %v738 = vadd.f32 0.0, %v737
    %v739 = vpop.f32.mrf.mxu0
    %740 = vdwg.mxu0
    %v741 = vadd.f32 %v158, %v738
    %v742 = vmul.f32 %v741, %v176
    %v743 = vtanh.pop %v742
    %v744 = vmul.f32 %v743, %v176
    %v745 = vadd.f32 %v744, %v177
    %v746 = vmul.f32 %v745, %v659
    %748 = vrot.lane.b32.xlu0 %v745, 64
    %v749 = vpop.permute.xlu0 %748
    %v751 = vmul.f32 %v745, %v749
    %753 = vrot.lane.b32.xlu0 %v751, 32
    %v754 = vpop.permute.xlu0 %753
    %v756 = vadd.f32 %v746, %v754
    %v757 = vtanh.pop %v756
    %759 = vrot.lane.b32.xlu0 %v757, 64
    %v760 = vpop.permute.xlu0 %759
    %v762 = vmul.f32 %v745, %v760
    %764 = vrot.lane.b32.xlu0 %v762, 32
    %v765 = vpop.permute.xlu0 %764
    %v766 = vsel %vm182, %v765, 0
    %768 = vmatprep.subr.mxu0 0.0
    %769 = vmatpush1.msra.mxu0 0.0
    %770 = vmatprep.subr.mxu0 0.0
    %771 = vmatpush1.msra.mxu0 0.0
    %772 = vmatprep.subr.mxu0 0.0
    %773 = vmatpush1.msra.mxu0 0.0
    %774 = vmatprep.subr.mxu0 0.0
    %775 = vmatpush1.msra.mxu0 0.0
    %776 = vmatprep.subr.mxu0 0.0
    %777 = vmatpush1.msra.mxu0 0.0
    %778 = vmatprep.subr.mxu0 0.0
    %779 = vmatpush1.msra.mxu0 0.0
    %780 = vmatprep.subr.mxu0 0.0
    %781 = vmatpush1.msra.mxu0 0.0
    %782 = vmatprep.subr.mxu0 0.0
    %783 = vmatpush1.msra.mxu0 0.0
    %784 = vmatprep.subr.mxu0 0.0
    %785 = vmatpush1.msra.mxu0 0.0
    %786 = vmatprep.subr.mxu0 0.0
    %787 = vmatpush1.msra.mxu0 0.0
    %788 = vmatprep.subr.mxu0 0.0
    %789 = vmatpush1.msra.mxu0 0.0
    %790 = vmatprep.subr.mxu0 0.0
    %791 = vmatpush1.msra.mxu0 0.0
    %792 = vmatprep.subr.mxu0 0.0
    %793 = vmatpush1.msra.mxu0 %v181
    %794 = vmatprep.subr.mxu0 0.0
    %795 = vmatpush1.msra.mxu0 %v180
    %796 = vmatprep.subr.mxu0 0.0
    %797 = vmatpush1.msra.mxu0 %v179
    %798 = vmatprep.subr.mxu0 0.0
    %799 = vmatpush1.msra.mxu0 %v178
    %800 = vmatprep.subr.mxu0 0.0
    %801 = vmatpush2.msra.mxu0 0.0
    %802 = vmatprep.subr.mxu0 0.0
    %803 = vmatpush2.msra.mxu0 0.0
    %804 = vmatprep.subr.mxu0 0.0
    %805 = vmatpush2.msra.mxu0 0.0
    %806 = vmatprep.subr.mxu0 0.0
    %807 = vmatpush2.msra.mxu0 0.0
    %808 = vmatprep.subr.mxu0 0.0
    %809 = vmatpush2.msra.mxu0 0.0
    %810 = vmatprep.subr.mxu0 0.0
    %811 = vmatpush2.msra.mxu0 0.0
    %812 = vmatprep.subr.mxu0 0.0
    %813 = vmatpush2.msra.mxu0 0.0
    %814 = vmatprep.subr.mxu0 0.0
    %815 = vmatpush2.msra.mxu0 0.0
    %816 = vmatprep.subr.mxu0 0.0
    %817 = vmatpush2.msra.mxu0 0.0
    %818 = vmatprep.subr.mxu0 0.0
    %819 = vmatpush2.msra.mxu0 0.0
    %820 = vmatprep.subr.mxu0 0.0
    %821 = vmatpush2.msra.mxu0 0.0
    %822 = vmatprep.subr.mxu0 0.0
    %823 = vmatpush2.msra.mxu0 0.0
    %824 = vmatprep.subr.mxu0 0.0
    %825 = vmatpush2.msra.mxu0 0.0
    %826 = vmatprep.subr.mxu0 0.0
    %827 = vmatpush2.msra.mxu0 0.0
    %828 = vmatprep.subr.mxu0 0.0
    %829 = vmatpush2.msra.mxu0 0.0
    %830 = vmatprep.subr.mxu0 0.0
    %831 = vmatpush2.msra.mxu0 0.0
    %832 = vmatprep.mubr.f32.mxu0 0.0
    %833 = vmatmul.mubr.f32.gmra.mxu0 %v766
    %v834 = vpop.f32.mrf.mxu0
    %v835 = vadd.f32 0.0, %v834
    %v836 = vpop.f32.mrf.mxu0
    %837 = vdwg.mxu0
    %v838 = vadd.f32 %v163, %v835
    %v839 = vmul.f32 %v838, %v176
    %v840 = vtanh.pop %v839
    %v841 = vmul.f32 %v840, %v176
    %v842 = vadd.f32 %v841, %v177
    %v843 = vmul.f32 %v842, %v756
    %845 = vrot.lane.b32.xlu0 %v842, 64
    %v846 = vpop.permute.xlu0 %845
    %v848 = vmul.f32 %v842, %v846
    %850 = vrot.lane.b32.xlu0 %v848, 32
    %v851 = vpop.permute.xlu0 %850
    %v853 = vadd.f32 %v843, %v851
    %v854 = vtanh.pop %v853
    %856 = vrot.lane.b32.xlu0 %v854, 64
    %v857 = vpop.permute.xlu0 %856
    %v859 = vmul.f32 %v842, %v857
    %861 = vrot.lane.b32.xlu0 %v859, 32
    %v862 = vpop.permute.xlu0 %861
    %v863 = vsel %vm182, %v862, 0
    %865 = vmatprep.subr.mxu0 0.0
    %866 = vmatpush1.msra.mxu0 0.0
    %867 = vmatprep.subr.mxu0 0.0
    %868 = vmatpush1.msra.mxu0 0.0
    %869 = vmatprep.subr.mxu0 0.0
    %870 = vmatpush1.msra.mxu0 0.0
    %871 = vmatprep.subr.mxu0 0.0
    %872 = vmatpush1.msra.mxu0 0.0
    %873 = vmatprep.subr.mxu0 0.0
    %874 = vmatpush1.msra.mxu0 0.0
    %875 = vmatprep.subr.mxu0 0.0
    %876 = vmatpush1.msra.mxu0 0.0
    %877 = vmatprep.subr.mxu0 0.0
    %878 = vmatpush1.msra.mxu0 0.0
    %879 = vmatprep.subr.mxu0 0.0
    %880 = vmatpush1.msra.mxu0 0.0
    %881 = vmatprep.subr.mxu0 0.0
    %882 = vmatpush1.msra.mxu0 0.0
    %883 = vmatprep.subr.mxu0 0.0
    %884 = vmatpush1.msra.mxu0 0.0
    %885 = vmatprep.subr.mxu0 0.0
    %886 = vmatpush1.msra.mxu0 0.0
    %887 = vmatprep.subr.mxu0 0.0
    %888 = vmatpush1.msra.mxu0 0.0
    %889 = vmatprep.subr.mxu0 0.0
    %890 = vmatpush1.msra.mxu0 %v181
    %891 = vmatprep.subr.mxu0 0.0
    %892 = vmatpush1.msra.mxu0 %v180
    %893 = vmatprep.subr.mxu0 0.0
    %894 = vmatpush1.msra.mxu0 %v179
    %895 = vmatprep.subr.mxu0 0.0
    %896 = vmatpush1.msra.mxu0 %v178
    %897 = vmatprep.subr.mxu0 0.0
    %898 = vmatpush2.msra.mxu0 0.0
    %899 = vmatprep.subr.mxu0 0.0
    %900 = vmatpush2.msra.mxu0 0.0
    %901 = vmatprep.subr.mxu0 0.0
    %902 = vmatpush2.msra.mxu0 0.0
    %903 = vmatprep.subr.mxu0 0.0
    %904 = vmatpush2.msra.mxu0 0.0
    %905 = vmatprep.subr.mxu0 0.0
    %906 = vmatpush2.msra.mxu0 0.0
    %907 = vmatprep.subr.mxu0 0.0
    %908 = vmatpush2.msra.mxu0 0.0
    %909 = vmatprep.subr.mxu0 0.0
    %910 = vmatpush2.msra.mxu0 0.0
    %911 = vmatprep.subr.mxu0 0.0
    %912 = vmatpush2.msra.mxu0 0.0
    %913 = vmatprep.subr.mxu0 0.0
    %914 = vmatpush2.msra.mxu0 0.0
    %915 = vmatprep.subr.mxu0 0.0
    %916 = vmatpush2.msra.mxu0 0.0
    %917 = vmatprep.subr.mxu0 0.0
    %918 = vmatpush2.msra.mxu0 0.0
    %919 = vmatprep.subr.mxu0 0.0
    %920 = vmatpush2.msra.mxu0 0.0
    %921 = vmatprep.subr.mxu0 0.0
    %922 = vmatpush2.msra.mxu0 0.0
    %923 = vmatprep.subr.mxu0 0.0
    %924 = vmatpush2.msra.mxu0 0.0
    %925 = vmatprep.subr.mxu0 0.0
    %926 = vmatpush2.msra.mxu0 0.0
    %927 = vmatprep.subr.mxu0 0.0
    %928 = vmatpush2.msra.mxu0 0.0
    %929 = vmatprep.mubr.f32.mxu0 0.0
    %930 = vmatmul.mubr.f32.gmra.mxu0 %v863
    %v931 = vpop.f32.mrf.mxu0
    %v932 = vadd.f32 0.0, %v931
    %v933 = vpop.f32.mrf.mxu0
    %934 = vdwg.mxu0
    %v935 = vadd.f32 %v168, %v932
    %v936 = vmul.f32 %v935, %v176
    %v937 = vtanh.pop %v936
    %v938 = vmul.f32 %v937, %v176
    %v939 = vadd.f32 %v938, %v177
    %v940 = vmul.f32 %v939, %v853
    %942 = vrot.lane.b32.xlu0 %v939, 64
    %v943 = vpop.permute.xlu0 %942
    %v945 = vmul.f32 %v939, %v943
    %947 = vrot.lane.b32.xlu0 %v945, 32
    %v948 = vpop.permute.xlu0 %947
    %v950 = vadd.f32 %v940, %v948
    %v951 = vtanh.pop %v950
    %953 = vrot.lane.b32.xlu0 %v951, 64
    %v954 = vpop.permute.xlu0 %953
    %v956 = vmul.f32 %v939, %v954
    %v957 = vld [vmem:[%s4] sm:$0xff]
    %v958 = vld [vmem:[%s4 + $0x8] sm:$0xff]
    %v959 = vld [vmem:[%s4 + $0x10] sm:$0xff]
    %v960 = vld [vmem:[%s4 + $0x18] sm:$0xff]
    %v961 = vld [vmem:[%s5] sm:$0x1]
    %v963 = vlaneseq
    %v964 = vshrl.u32 %v963, 7
    %v965 = vsub.s32 0, %v964
    %v966 = vrot.slane %v961, %v965
    %969 = vrot.lane.b32.xlu0 %v956, 32
    %v970 = vpop.permute.xlu0 %969
    %v971 = vsel %vm182, %v970, 0
    %973 = vmatprep.subr.mxu0 0.0
    %974 = vmatpush1.msra.mxu0 0.0
    %975 = vmatprep.subr.mxu0 0.0
    %976 = vmatpush1.msra.mxu0 0.0
    %977 = vmatprep.subr.mxu0 0.0
    %978 = vmatpush1.msra.mxu0 0.0
    %979 = vmatprep.subr.mxu0 0.0
    %980 = vmatpush1.msra.mxu0 0.0
    %981 = vmatprep.subr.mxu0 0.0
    %982 = vmatpush1.msra.mxu0 0.0
    %983 = vmatprep.subr.mxu0 0.0
    %984 = vmatpush1.msra.mxu0 0.0
    %985 = vmatprep.subr.mxu0 0.0
    %986 = vmatpush1.msra.mxu0 0.0
    %987 = vmatprep.subr.mxu0 0.0
    %988 = vmatpush1.msra.mxu0 0.0
    %989 = vmatprep.subr.mxu0 0.0
    %990 = vmatpush1.msra.mxu0 0.0
    %991 = vmatprep.subr.mxu0 0.0
    %992 = vmatpush1.msra.mxu0 0.0
    %993 = vmatprep.subr.mxu0 0.0
    %994 = vmatpush1.msra.mxu0 0.0
    %995 = vmatprep.subr.mxu0 0.0
    %996 = vmatpush1.msra.mxu0 0.0
    %997 = vmatprep.subr.mxu0 0.0
    %998 = vmatpush1.msra.mxu0 %v960
    %999 = vmatprep.subr.mxu0 0.0
    %1000 = vmatpush1.msra.mxu0 %v959
    %1001 = vmatprep.subr.mxu0 0.0
    %1002 = vmatpush1.msra.mxu0 %v958
    %1003 = vmatprep.subr.mxu0 0.0
    %1004 = vmatpush1.msra.mxu0 %v957
    %1005 = vmatprep.subr.mxu0 0.0
    %1006 = vmatpush2.msra.mxu0 0.0
    %1007 = vmatprep.subr.mxu0 0.0
    %1008 = vmatpush2.msra.mxu0 0.0
    %1009 = vmatprep.subr.mxu0 0.0
    %1010 = vmatpush2.msra.mxu0 0.0
    %1011 = vmatprep.subr.mxu0 0.0
    %1012 = vmatpush2.msra.mxu0 0.0
    %1013 = vmatprep.subr.mxu0 0.0
    %1014 = vmatpush2.msra.mxu0 0.0
    %1015 = vmatprep.subr.mxu0 0.0
    %1016 = vmatpush2.msra.mxu0 0.0
    %1017 = vmatprep.subr.mxu0 0.0
    %1018 = vmatpush2.msra.mxu0 0.0
    %1019 = vmatprep.subr.mxu0 0.0
    %1020 = vmatpush2.msra.mxu0 0.0
    %1021 = vmatprep.subr.mxu0 0.0
    %1022 = vmatpush2.msra.mxu0 0.0
    %1023 = vmatprep.subr.mxu0 0.0
    %1024 = vmatpush2.msra.mxu0 0.0
    %1025 = vmatprep.subr.mxu0 0.0
    %1026 = vmatpush2.msra.mxu0 0.0
    %1027 = vmatprep.subr.mxu0 0.0
    %1028 = vmatpush2.msra.mxu0 0.0
    %1029 = vmatprep.subr.mxu0 0.0
    %1030 = vmatpush2.msra.mxu0 0.0
    %1031 = vmatprep.subr.mxu0 0.0
    %1032 = vmatpush2.msra.mxu0 0.0
    %1033 = vmatprep.subr.mxu0 0.0
    %1034 = vmatpush2.msra.mxu0 0.0
    %1035 = vmatprep.subr.mxu0 0.0
    %1036 = vmatpush2.msra.mxu0 0.0
    %1037 = vmatprep.mubr.f32.mxu0 0.0
    %1038 = vmatmul.mubr.f32.gmra.mxu0 %v971
    %v1039 = vpop.f32.mrf.mxu0
    %v1040 = vadd.f32 %v966, %v1039
    %v1041 = vpop.f32.mrf.mxu0
    %1042 = vdwg.mxu0
    %vm1043 = vcmask 64512
    %1044 = vst.msk [vmem:[#allocation2] sm:$0xff] %vm1043, %v1040
    // Predicated region
    $region26: #{tpu_custom_call.1} parent=1 // pred_check
      _
    $region27: #{tpu_custom_call.1} parent=1 // pred_check_branch
      %1046 = sbr.rel (0) target = $region29
    $region28: #{tpu_custom_call.1} parent=1 // pred_region
      %s1048 = ssub.s32 128, 128
      %1049 = vsyncadd [#allocation3], %s1048
      %s1051 = sshll.u32 [#allocation2], 4
      %s1052 = int_to_ptr.vmem [resolvable:$true] %s1051
      %1054 = dma.vmem_to_hbm [thread:$0]  %s1052, 128, %s6, [#allocation3]
    $region29: #{tpu_custom_call.1} parent=1 // pred_fallthru
      _
    // Predicated region
    $region30: #{tpu_custom_call.1} parent=1 // pred_check
      _
    $region31: #{tpu_custom_call.1} parent=1 // pred_check_branch
      %1056 = sbr.rel (0) target = $region33
    $region32: #{tpu_custom_call.1} parent=1 // pred_region
      %1057 = dma.done [#allocation3], 128
    $region33: #{tpu_custom_call.1} parent=1 // pred_fallthru
      _
    %1058 = vsyncpa [#allocation3], 1

</llo_original>
